<compile_context>
chip_gen: v6e
topology: v6e:2x2x1
jax: 0.10.0
libtpu: 0.0.40
codegen_flags: <defaults>
</compile_context>

<pallas_src>
import functools

import jax
import jax.numpy as jnp
from jax.experimental import pallas as pl
from jax.experimental.pallas import tpu as pltpu


def _round_up(x, m):
    return (x + m - 1) // m * m


def _largest_aligned_divisor(total, align, cap):
    """Largest t = align*d such that t divides `total` and t <= cap.

    Assumes total % align == 0.  Used to pick tm/tk from divisors of the
    aligned extents so the grid covers the arrays with zero padding waste.
    """
    n = total // align
    best = align
    for d in range(1, n + 1):
        if n % d == 0 and align * d <= cap:
            best = align * d
    return best


def _num_tensorcores():
    """Best-effort TensorCore count (v7x has 2 TCs/chip, v5e/v6e have 1)."""
    try:
        kind = jax.devices()[0].device_kind.lower()
        if "v7" in kind:
            return 2
    except Exception:
        pass
    return 1


# ----------------------------------------------------------------------------
# Pallas kernel: K-tiled feature matmul + fused 128-lane head + reparameterize
# ----------------------------------------------------------------------------
def _disc_kernel(img_ref, c_ref, eps_ref,
                 w1i_ref, w1c_ref, b1_ref,
                 wh_ref, bh_ref,
                 out_ref, acc_ref, *, latent_dim, head_width):
    k = pl.program_id(1)
    nk = pl.num_programs(1)

    # k == 0: initialize hidden accumulator with conditioning branch + bias,
    # and pre-zero the z / pad half of the output slab (out block is resident
    # across the whole K axis, so this one 128-lane store covers every k).
    @pl.when(k == 0)
    def _():
        acc_ref[...] = (
            jnp.dot(c_ref[...].astype(jnp.bfloat16), w1c_ref[...],
                    preferred_element_type=jnp.float32)
            + b1_ref[...])
        out_ref[:, head_width:] = jnp.zeros(
            (out_ref.shape[0], head_width), out_ref.dtype)

    # Accumulate this K-slice of the flattened-image matmul.
    # The image streams from HBM as f32; cast to bf16 per tile here (no extra
    # wrapper-side HBM pad+cast pass), accumulate in f32 on the MXU.
    acc_ref[...] += jnp.dot(img_ref[...].astype(jnp.bfloat16), w1i_ref[...],
                            preferred_element_type=jnp.float32)

    # k == last: activation, single fused head matmul, reparameterize, stores.
    @pl.when(k == nk - 1)
    def _():
        h = acc_ref[...]
        h = jnp.where(h >= 0.0, h, 0.2 * h)                  # leaky ReLU(0.2)

        # Fused lane-dense head: cols [0:D)=mu, [D:2D)=log_var, [2D]=score x.
        # TODO(synk): if H >= 512 and the bundle dump shows epilogue vreg
        #             spills, chunk this activation+cast+dot over 256-col
        #             slices of H instead of one pass.
        r = jnp.dot(h.astype(wh_ref.dtype), wh_ref[...],
                    preferred_element_type=jnp.float32) + bh_ref[...]

        mu = r[:, :latent_dim]
        lv = r[:, latent_dim:2 * latent_dim]
        # reparameterize: z = eps * exp(0.5 * logvar) + mu   (exp -> EUP slot)
        z = eps_ref[...] * jnp.exp(0.5 * lv) + mu

        # Two stores, no concatenate temps:
        #   [0:128)   = (mu | log_var | x | 0...)  -- unmasked 128-lane store
        #   [128:160) = z                          -- small masked store
        out_ref[:, :head_width] = r
        out_ref[:, head_width:head_width + latent_dim] = z


# ----------------------------------------------------------------------------
# One-time parameter preparation (hoisted out of the per-forward path)
# ----------------------------------------------------------------------------
def prepare_params(raw, latent_dim, head_width=128):
    """Pad + cast weights and build the fused 128-lane head, once per model."""
    K, H = raw["w1_img"].shape
    D = latent_dim
    assert 2 * D + 1 <= head_width, "latent_dim too large for the fused head"
    assert H % 128 == 0, "hidden_dim must be lane-dense (multiple of 128)"
    # Note: prefer H % 256 == 0 on v6e/v7x (2x256^2 MXUs) if ever MXU-bound.

    K_pad = _round_up(K, 128)
    w1_img = raw["w1_img"]
    if K_pad != K:
        w1_img = jnp.pad(w1_img, ((0, K_pad - K), (0, 0)))

    w_heads = jnp.zeros((H, head_width), jnp.float32)
    w_heads = w_heads.at[:, :D].set(raw["wmu"])
    w_heads = w_heads.at[:, D:2 * D].set(raw["wlv"])
    w_heads = w_heads.at[:, 2 * D:2 * D + 1].set(raw["wx"])

    b_heads = jnp.zeros((1, head_width), jnp.float32)
    b_heads = b_heads.at[:, :D].set(raw["bmu"])
    b_heads = b_heads.at[:, D:2 * D].set(raw["blv"])
    b_heads = b_heads.at[:, 2 * D:2 * D + 1].set(raw["bx"])

    return dict(
        w1_img=w1_img.astype(jnp.bfloat16),     # [K_pad, H] bf16
        w1_c=raw["w1_c"].astype(jnp.bfloat16),  # [c_dim, H] bf16
        b1=raw["b1"].astype(jnp.float32),       # [1, H] f32
        w_heads=w_heads.astype(jnp.bfloat16),   # [H, 128] bf16
        b_heads=b_heads,                        # [1, 128] f32
        latent_dim=D,
        feat_dim=K,
    )


def init_params(key, img_feat_dim, c_dim, hidden_dim, latent_dim):
    """Deterministic parameter init; returns kernel-ready (prepared) params."""
    ks = jax.random.split(key, 5)

    def lin(k, fan_in, fan_out, fan_total=None):
        scale = 1.0 / jnp.sqrt(jnp.float32(fan_total if fan_total else fan_in))
        w = jax.random.normal(k, (fan_in, fan_out), jnp.float32) * scale
        b = jnp.zeros((1, fan_out), jnp.float32)
        return w, b

    fan1 = img_feat_dim + c_dim
    w1_img, b1 = lin(ks[0], img_feat_dim, hidden_dim, fan1)
    w1_c, _ = lin(ks[1], c_dim, hidden_dim, fan1)
    wx, bx = lin(ks[2], hidden_dim, 1)
    wmu, bmu = lin(ks[3], hidden_dim, latent_dim)
    wlv, blv = lin(ks[4], hidden_dim, latent_dim)
    raw = dict(w1_img=w1_img, w1_c=w1_c, b1=b1,
               wx=wx, bx=bx, wmu=wmu, bmu=bmu, wlv=wlv, blv=blv)
    return prepare_params(raw, latent_dim)


# ----------------------------------------------------------------------------
# pallas_call wrapper (tiling, minimal padding, per-gen VMEM budgeting)
# ----------------------------------------------------------------------------
def discriminator_pallas(img_flat, c, eps, params, *, tm_max=256, tk_max=2048):
    """img_flat: [B, K] f32, c: [B, c_dim] f32, eps: [B, D] f32 ~ N(0,1).

    tk is chosen as the largest divisor of the 128-aligned K that fits an
    explicit VMEM stream budget (double-buffered f32 img tile + bf16 w1
    slice <= ~36 MiB), so the same defaults are safe on v5e / v6e / v7x.
    """
    B, K = img_flat.shape
    c_dim = c.shape[-1]
    w1i, w1c, b1 = params["w1_img"], params["w1_c"], params["b1"]
    wh, bh = params["w_heads"], params["b_heads"]
    D = params["latent_dim"]
    K_pad, H = w1i.shape
    NH = wh.shape[1]
    assert K_pad == _round_up(K, 128), "params prepared for a different K"
    assert eps.shape[-1] == D

    # --- batch tiling: divisor-based tiles, minimal padding ------------------
    if B < 8:
        B_pad, tm = B, B                       # block == full dim (allowed)
    else:
        B_pad = _round_up(B, 8)
        tm = _largest_aligned_divisor(B_pad, 8, tm_max)
    # v7x: guarantee >=2 batch tiles so "parallel" shards across both TCs.
    if _num_tensorcores() >= 2 and B_pad >= 16 and B_pad // tm == 1:
        tm = _largest_aligned_divisor(B_pad, 8, max(8, B_pad // 2))

    # --- K tiling under an explicit VMEM stream budget ----------------------
    stream_budget = 36 * (1 << 20)             # double-buffered img + w1 slices
    n = K_pad // 128
    tk = 128
    for d in range(1, n + 1):
        if n % d:
            continue
        cand = 128 * d
        if cand > tk_max:
            continue
        stream = 2 * (tm * cand * 4) + 2 * (cand * H * 2)
        if stream <= stream_budget:
            tk = max(tk, cand)

    # --- activations: pad only when required, NO wrapper-side cast ----------
    img_flat = img_flat.astype(jnp.float32)
    c = c.astype(jnp.float32)
    eps = eps.astype(jnp.float32)
    if B_pad != B:
        img_flat = jnp.pad(img_flat, ((0, B_pad - B), (0, 0)))
        c = jnp.pad(c, ((0, B_pad - B), (0, 0)))
        eps = jnp.pad(eps, ((0, B_pad - B), (0, 0)))
    if K_pad != K:
        img_flat = jnp.pad(img_flat, ((0, 0), (0, K_pad - K)))

    grid = (B_pad // tm, K_pad // tk)

    # Explicit VMEM limit: streamed tiles + accumulator + resident operands,
    # capped at 48 MiB (safe on v5e/v6e's 128 MiB and v7x's 64 MiB physical).
    est_vmem = (2 * (tm * tk * 4) + 2 * (tk * H * 2)         # img + w1 slices
                + tm * H * 4                                 # f32 accumulator
                + 2 * (tm * 2 * NH * 4)                      # output slab
                + 2 * (tm * (c_dim + D) * 4)                 # c + eps
                + H * NH * 2 + c_dim * H * 2 + (H + NH) * 4)  # resident weights
    vmem_limit = min(48 * (1 << 20), max(32 * (1 << 20), int(est_vmem * 1.5)))

    kernel = functools.partial(_disc_kernel, latent_dim=D, head_width=NH)

    out = pl.pallas_call(
        kernel,
        out_shape=jax.ShapeDtypeStruct((B_pad, 2 * NH), jnp.float32),
        grid=grid,
        in_specs=[
            pl.BlockSpec((tm, tk), lambda i, k: (i, k)),      # img f32 K-slice
            pl.BlockSpec((tm, c_dim), lambda i, k: (i, 0)),   # conditioning c
            pl.BlockSpec((tm, D), lambda i, k: (i, 0)),       # eps noise
            pl.BlockSpec((tk, H), lambda i, k: (k, 0)),       # w1_img K-slice
            pl.BlockSpec((c_dim, H), lambda i, k: (0, 0)),    # w1_c
            pl.BlockSpec((1, H), lambda i, k: (0, 0)),        # b1
            pl.BlockSpec((H, NH), lambda i, k: (0, 0)),       # fused head W
            pl.BlockSpec((1, NH), lambda i, k: (0, 0)),       # fused head b
        ],
        out_specs=pl.BlockSpec((tm, 2 * NH), lambda i, k: (i, 0)),
        scratch_shapes=[pltpu.VMEM((tm, H), jnp.float32)],    # hidden accum
        compiler_params=pltpu.CompilerParams(
            dimension_semantics=("parallel", "arbitrary"),
            vmem_limit_bytes=vmem_limit),
    )(img_flat, c, eps, w1i, w1c, b1, wh, bh)

    mu = out[:B, :D]
    log_var = out[:B, D:2 * D]
    x = out[:B, 2 * D:2 * D + 1]
    z = out[:B, NH:NH + D]
    return x, z, mu, log_var


# ----------------------------------------------------------------------------
# Module-level wrapper mirroring the PyTorch interface
# ----------------------------------------------------------------------------
def discriminator_forward(img, c, role, params, eps):
    """
    Mirrors Discriminator.forward:
        x, z, mu, log_var = inner_forward(img, c, role)
        return x if role == 'discriminator' else (x, z, mu, log_var)
    img: [B, C, H, W] (NCHW), c: [B, c_dim], eps: [B, latent_dim] ~ N(0,1)
    """
    B = img.shape[0]
    img_flat = img.reshape(B, -1)
    x, z, mu, log_var = discriminator_pallas(img_flat, c, eps, params)
    if role == "discriminator":
        return x
    return (x, z, mu, log_var)


# ----------------------------------------------------------------------------
if __name__ == "__main__":
    B = 2
    img_channels = 4
    img_resolution = 16
    c_dim = 8
    hidden_dim = 128
    latent_dim = 32

    key = jax.random.PRNGKey(0)
    k_img, k_c, k_eps, k_par = jax.random.split(key, 4)

    img = jax.random.normal(
        k_img, (B, img_channels, img_resolution, img_resolution), jnp.float32)
    c = jax.random.normal(k_c, (B, c_dim), jnp.float32)
    # torch.randn_like(std) equivalent: standard-normal noise for reparameterize
    eps = jax.random.normal(k_eps, (B, latent_dim), jnp.float32)

    img_feat_dim = img_channels * img_resolution * img_resolution
    params = init_params(k_par, img_feat_dim, c_dim, hidden_dim, latent_dim)

    # role == 'discriminator' -> returns only the score x
    x = discriminator_forward(img, c, "discriminator", params, eps)
    x = jax.block_until_ready(x)
    assert x.shape == (B, 1)

    # any other role -> returns (x, z, mu, log_var)
    x2, z, mu, log_var = discriminator_forward(img, c, "encoder", params, eps)
    jax.block_until_ready((x2, z, mu, log_var))
    assert x2.shape == (B, 1)
    assert z.shape == (B, latent_dim)
    assert mu.shape == (B, latent_dim)
    assert log_var.shape == (B, latent_dim)
    assert jnp.allclose(x, x2, atol=1e-6)

    # sanity: reparameterization semantics z = eps*exp(0.5*logvar) + mu
    z_ref = eps * jnp.exp(0.5 * log_var) + mu
    assert jnp.allclose(z, z_ref, atol=1e-4, rtol=1e-4)

    print("KERNEL_OK")
</pallas_src>

<mosaic_0001>
module attributes {stable_mosaic.version = 11 : i64} {
  func.func @_disc_kernel(%arg0: i32, %arg1: i32, %arg2: memref<2x1024xf32, #tpu.memory_space<vmem>>, %arg3: memref<2x8xf32, #tpu.memory_space<vmem>>, %arg4: memref<2x32xf32, #tpu.memory_space<vmem>>, %arg5: memref<1024x128xbf16, #tpu.memory_space<vmem>>, %arg6: memref<8x128xbf16, #tpu.memory_space<vmem>>, %arg7: memref<1x128xf32, #tpu.memory_space<vmem>>, %arg8: memref<128x128xbf16, #tpu.memory_space<vmem>>, %arg9: memref<1x128xf32, #tpu.memory_space<vmem>>, %arg10: memref<2x256xf32, #tpu.memory_space<vmem>>, %arg11: memref<2x128xf32, #tpu.memory_space<vmem>>) attributes {dimension_semantics = [#tpu.dimension_semantics<parallel>, #tpu.dimension_semantics<arbitrary>], iteration_bounds = array<i64: 1, 1>, scalar_prefetch = 0 : i64, scratch_operands = 1 : i64, tpu.core_type = #tpu.core_type<tc>, window_params = [{transform_indices = @transform_0, window_bounds = array<i64: 2, 1024>}, {transform_indices = @transform_1, window_bounds = array<i64: 2, 8>}, {transform_indices = @transform_2, window_bounds = array<i64: 2, 32>}, {transform_indices = @transform_3, window_bounds = array<i64: 1024, 128>}, {pipeline_mode = #tpu.pipeline_mode<synchronous>, transform_indices = @transform_4, window_bounds = array<i64: 8, 128>}, {pipeline_mode = #tpu.pipeline_mode<synchronous>, transform_indices = @transform_5, window_bounds = array<i64: 1, 128>}, {pipeline_mode = #tpu.pipeline_mode<synchronous>, transform_indices = @transform_6, window_bounds = array<i64: 128, 128>}, {pipeline_mode = #tpu.pipeline_mode<synchronous>, transform_indices = @transform_7, window_bounds = array<i64: 1, 128>}, {transform_indices = @transform_8, window_bounds = array<i64: 2, 256>}]} {
    %c0_i32 = arith.constant 0 : i32
    %0 = arith.cmpi eq, %arg1, %c0_i32 : i32
    %1 = arith.extui %0 : i1 to i32
    %c0_i32_0 = arith.constant 0 : i32
    %2 = arith.cmpi ne, %1, %c0_i32_0 : i32
    scf.if %2 {
      %c0_10 = arith.constant 0 : index
      %c0_11 = arith.constant 0 : index
      %13 = vector.load %arg3[%c0_10, %c0_11] : memref<2x8xf32, #tpu.memory_space<vmem>>, vector<2x8xf32>
      %14 = arith.truncf %13 : vector<2x8xf32> to vector<2x8xbf16>
      %c0_12 = arith.constant 0 : index
      %c0_13 = arith.constant 0 : index
      %15 = vector.load %arg6[%c0_12, %c0_13] : memref<8x128xbf16, #tpu.memory_space<vmem>>, vector<8x128xbf16>
      %cst_14 = arith.constant dense<0.000000e+00> : vector<2x128xf32>
      %16 = tpu.matmul %14, %15, %cst_14 {dimension_numbers = #tpu.dot_dimension_numbers<[1], [0], [0], [1], [0, 0, 1, 1], [], []>} : vector<2x8xbf16>, vector<8x128xbf16>, vector<2x128xf32> -> vector<2x128xf32>
      %c0_15 = arith.constant 0 : index
      %c0_16 = arith.constant 0 : index
      %17 = vector.load %arg7[%c0_15, %c0_16] : memref<1x128xf32, #tpu.memory_space<vmem>>, vector<1x128xf32>
      %18 = vector.broadcast %17 : vector<1x128xf32> to vector<2x128xf32>
      %19 = arith.addf %16, %18 : vector<2x128xf32>
      %c0_17 = arith.constant 0 : index
      %c0_18 = arith.constant 0 : index
      %20 = vector.load %arg11[%c0_17, %c0_18] : memref<2x128xf32, #tpu.memory_space<vmem>>, vector<2x128xf32>
      tpu.vector_store %arg11[%c0_17, %c0_18], %19 {strides = array<i32>} : memref<2x128xf32, #tpu.memory_space<vmem>>, vector<2x128xf32>,
      %cst_19 = arith.constant 0.000000e+00 : f32
      %21 = vector.broadcast %cst_19 : f32 to vector<2x128xf32>
      %c0_20 = arith.constant 0 : index
      %c128 = arith.constant 128 : index
      %22 = vector.load %arg10[%c0_20, %c128] : memref<2x256xf32, #tpu.memory_space<vmem>>, vector<2x128xf32>
      tpu.vector_store %arg10[%c0_20, %c128], %21 {strides = array<i32>} : memref<2x256xf32, #tpu.memory_space<vmem>>, vector<2x128xf32>,
    } else {
    }
    %c0 = arith.constant 0 : index
    %c0_1 = arith.constant 0 : index
    %3 = vector.load %arg11[%c0, %c0_1] : memref<2x128xf32, #tpu.memory_space<vmem>>, vector<2x128xf32>
    %c0_2 = arith.constant 0 : index
    %c0_3 = arith.constant 0 : index
    %4 = vector.load %arg2[%c0_2, %c0_3] : memref<2x1024xf32, #tpu.memory_space<vmem>>, vector<2x1024xf32>
    %5 = arith.truncf %4 : vector<2x1024xf32> to vector<2x1024xbf16>
    %c0_4 = arith.constant 0 : index
    %c0_5 = arith.constant 0 : index
    %6 = vector.load %arg5[%c0_4, %c0_5] : memref<1024x128xbf16, #tpu.memory_space<vmem>>, vector<1024x128xbf16>
    %cst = arith.constant dense<0.000000e+00> : vector<2x128xf32>
    %7 = tpu.matmul %5, %6, %cst {dimension_numbers = #tpu.dot_dimension_numbers<[1], [0], [0], [1], [0, 0, 1, 1], [], []>} : vector<2x1024xbf16>, vector<1024x128xbf16>, vector<2x128xf32> -> vector<2x128xf32>
    %8 = arith.addf %3, %7 : vector<2x128xf32>
    %c0_6 = arith.constant 0 : index
    %c0_7 = arith.constant 0 : index
    %9 = vector.load %arg11[%c0_6, %c0_7] : memref<2x128xf32, #tpu.memory_space<vmem>>, vector<2x128xf32>
    tpu.vector_store %arg11[%c0_6, %c0_7], %8 {strides = array<i32>} : memref<2x128xf32, #tpu.memory_space<vmem>>, vector<2x128xf32>,
    %c0_i32_8 = arith.constant 0 : i32
    %10 = arith.cmpi eq, %arg1, %c0_i32_8 : i32
    %11 = arith.extui %10 : i1 to i32
    %c0_i32_9 = arith.constant 0 : i32
    %12 = arith.cmpi ne, %11, %c0_i32_9 : i32
    scf.if %12 {
      %c0_10 = arith.constant 0 : index
      %c0_11 = arith.constant 0 : index
      %13 = vector.load %arg11[%c0_10, %c0_11] : memref<2x128xf32, #tpu.memory_space<vmem>>, vector<2x128xf32>
      %cst_12 = arith.constant 0.000000e+00 : f32
      %14 = vector.broadcast %cst_12 : f32 to vector<2x128xf32>
      %15 = arith.cmpf oge, %13, %14 : vector<2x128xf32>
      %cst_13 = arith.constant 2.000000e-01 : f32
      %16 = vector.broadcast %cst_13 : f32 to vector<2x128xf32>
      %17 = arith.mulf %16, %13 : vector<2x128xf32>
      %18 = arith.select %15, %13, %17 : vector<2x128xi1>, vector<2x128xf32>
      %19 = arith.truncf %18 : vector<2x128xf32> to vector<2x128xbf16>
      %c0_14 = arith.constant 0 : index
      %c0_15 = arith.constant 0 : index
      %20 = vector.load %arg8[%c0_14, %c0_15] : memref<128x128xbf16, #tpu.memory_space<vmem>>, vector<128x128xbf16>
      %cst_16 = arith.constant dense<0.000000e+00> : vector<2x128xf32>
      %21 = tpu.matmul %19, %20, %cst_16 {dimension_numbers = #tpu.dot_dimension_numbers<[1], [0], [0], [1], [0, 0, 1, 1], [], []>} : vector<2x128xbf16>, vector<128x128xbf16>, vector<2x128xf32> -> vector<2x128xf32>
      %c0_17 = arith.constant 0 : index
      %c0_18 = arith.constant 0 : index
      %22 = vector.load %arg9[%c0_17, %c0_18] : memref<1x128xf32, #tpu.memory_space<vmem>>, vector<1x128xf32>
      %23 = vector.broadcast %22 : vector<1x128xf32> to vector<2x128xf32>
      %24 = arith.addf %21, %23 : vector<2x128xf32>
      %25 = vector.extract_strided_slice %24 {offsets = [0, 0], sizes = [2, 32], strides = [1, 1]} : vector<2x128xf32> to vector<2x32xf32>
      %26 = vector.extract_strided_slice %24 {offsets = [0, 32], sizes = [2, 32], strides = [1, 1]} : vector<2x128xf32> to vector<2x32xf32>
      %c0_19 = arith.constant 0 : index
      %c0_20 = arith.constant 0 : index
      %27 = vector.load %arg4[%c0_19, %c0_20] : memref<2x32xf32, #tpu.memory_space<vmem>>, vector<2x32xf32>
      %cst_21 = arith.constant 5.000000e-01 : f32
      %28 = vector.broadcast %cst_21 : f32 to vector<2x32xf32>
      %29 = arith.mulf %28, %26 : vector<2x32xf32>
      %30 = math.exp %29 : vector<2x32xf32>
      %31 = arith.mulf %27, %30 : vector<2x32xf32>
      %32 = arith.addf %31, %25 : vector<2x32xf32>
      %c0_22 = arith.constant 0 : index
      %c0_23 = arith.constant 0 : index
      %33 = vector.load %arg10[%c0_22, %c0_23] : memref<2x256xf32, #tpu.memory_space<vmem>>, vector<2x128xf32>
      tpu.vector_store %arg10[%c0_22, %c0_23], %24 {strides = array<i32>} : memref<2x256xf32, #tpu.memory_space<vmem>>, vector<2x128xf32>,
      %c0_24 = arith.constant 0 : index
      %c128 = arith.constant 128 : index
      %34 = vector.load %arg10[%c0_24, %c128] : memref<2x256xf32, #tpu.memory_space<vmem>>, vector<2x32xf32>
      tpu.vector_store %arg10[%c0_24, %c128], %32 {strides = array<i32>} : memref<2x256xf32, #tpu.memory_space<vmem>>, vector<2x32xf32>,
    } else {
    }
    return
  }
  func.func @transform_0(%arg0: i32, %arg1: i32) -> (i32, i32) {
    %c0_i32 = arith.constant 0 : i32
    return %arg0, %arg1 : i32, i32
  }
  func.func @transform_1(%arg0: i32, %arg1: i32) -> (i32, i32) {
    %c0_i32 = arith.constant 0 : i32
    %c0_i32_0 = arith.constant 0 : i32
    return %arg0, %c0_i32 : i32, i32
  }
  func.func @transform_2(%arg0: i32, %arg1: i32) -> (i32, i32) {
    %c0_i32 = arith.constant 0 : i32
    %c0_i32_0 = arith.constant 0 : i32
    return %arg0, %c0_i32 : i32, i32
  }
  func.func @transform_3(%arg0: i32, %arg1: i32) -> (i32, i32) {
    %c0_i32 = arith.constant 0 : i32
    %c0_i32_0 = arith.constant 0 : i32
    return %arg1, %c0_i32 : i32, i32
  }
  func.func @transform_4(%arg0: i32, %arg1: i32) -> (i32, i32) {
    %c0_i32 = arith.constant 0 : i32
    %c0_i32_0 = arith.constant 0 : i32
    %c0_i32_1 = arith.constant 0 : i32
    return %c0_i32, %c0_i32_0 : i32, i32
  }
  func.func @transform_5(%arg0: i32, %arg1: i32) -> (i32, i32) {
    %c0_i32 = arith.constant 0 : i32
    %c0_i32_0 = arith.constant 0 : i32
    %c0_i32_1 = arith.constant 0 : i32
    return %c0_i32, %c0_i32_0 : i32, i32
  }
  func.func @transform_6(%arg0: i32, %arg1: i32) -> (i32, i32) {
    %c0_i32 = arith.constant 0 : i32
    %c0_i32_0 = arith.constant 0 : i32
    %c0_i32_1 = arith.constant 0 : i32
    return %c0_i32, %c0_i32_0 : i32, i32
  }
  func.func @transform_7(%arg0: i32, %arg1: i32) -> (i32, i32) {
    %c0_i32 = arith.constant 0 : i32
    %c0_i32_0 = arith.constant 0 : i32
    %c0_i32_1 = arith.constant 0 : i32
    return %c0_i32, %c0_i32_0 : i32, i32
  }
  func.func @transform_8(%arg0: i32, %arg1: i32) -> (i32, i32) {
    %c0_i32 = arith.constant 0 : i32
    %c0_i32_0 = arith.constant 0 : i32
    return %arg0, %c0_i32 : i32, i32
  }
}

</mosaic_0001>

<llo_original>
// kernel: tpu_custom_call.1
$region0: #{tpu_custom_call.1}
  #allocation0 [shape = 'u32[]', space=smem, size = 0x4, offset = 0x4, fixed_abs, tag = 'smem constant byte address 0x4 - core index']
  #allocation1 [shape = 'u32[144,128]{1,0:T(1,128)}', space=vmem, size = 0x12000, scoped, tag = 'internal scratch']
  #allocation2 [shape = 'f32[2,128]{1,0:T(2,128)}', space=vmem, size = 0x400, scoped, tag = 'scratch operand']
  %s0 = inlined_call_operand.hbm [shape: f32[2,1024], index: 0, kind: input, shape index: {}]
  %s1 = inlined_call_operand.hbm [shape: f32[2,8], index: 1, kind: input, shape index: {}]
  %s2 = inlined_call_operand.vmem [shape: f32[2,32], index: 2, kind: input, shape index: {}]
  %s3 = inlined_call_operand.hbm [shape: bf16[1024,128], index: 3, kind: input, shape index: {}]
  %s4 = inlined_call_operand.vmem [shape: bf16[8,128], index: 4, kind: input, shape index: {}]
  %s5 = inlined_call_operand.vmem [shape: f32[1,128], index: 5, kind: input, shape index: {}]
  %s6 = inlined_call_operand.hbm [shape: bf16[128,128], index: 6, kind: input, shape index: {}]
  %s7 = inlined_call_operand.vmem [shape: f32[1,128], index: 7, kind: input, shape index: {}]
  %s8 = inlined_call_operand.hbm [shape: f32[2,256], index: 8, kind: output, shape index: {}]
  %s9 = sld [smem:[#allocation0]]
  $region66: #{tpu_custom_call.1} parent=0
    _
  %s11 = ssub.s32 1, %s9
  %s12 = scalar_select 0, %s11, %s9
  $region1: #{tpu_custom_call.1} parent=0
    #allocation3 [shape = 'u8[8192]{0}', space=vmem, size = 0x2000, scoped, tag = 'input window, operand 0, single buffered']
    #allocation4 [shape = 's32[1]{0}', space=sflag, size = 0x4, scoped, tag = 'scoped memory for tpu_custom_call.1']
    #allocation5 [shape = 's32[1]{0}', space=sflag, size = 0x4, scoped, tag = 'scoped memory for tpu_custom_call.1']
    #allocation6 [shape = 'u8[1024]{0}', space=vmem, size = 0x400, scoped, tag = 'input window, operand 1, single buffered']
    #allocation7 [shape = 's32[1]{0}', space=sflag, size = 0x4, scoped, tag = 'scoped memory for tpu_custom_call.1']
    #allocation8 [shape = 'u8[262144]{0}', space=vmem, size = 0x40000, scoped, tag = 'input window, operand 3, single buffered']
    #allocation9 [shape = 'u8[32768]{0}', space=vmem, size = 0x8000, scoped, tag = 'input window, operand 6, single buffered']
    #allocation10 [shape = 's32[1]{0}', space=sflag, size = 0x4, scoped, tag = 'scoped memory for tpu_custom_call.1']
    #allocation11 [shape = 'u8[2048]{0}', space=vmem, size = 0x800, scoped, tag = 'output window, operand 0, single buffered']
    %13 = vsyncpa [#allocation4], 0
    %14 = vsyncpa [#allocation7], 0
    %15 = vsyncpa [#allocation10], 0
    %16 = vsyncpa [#allocation5], 0
    // Predicated region
    $region2: #{tpu_custom_call.1} parent=1 // pred_check
      _
    $region3: #{tpu_custom_call.1} parent=1 // pred_check_branch
      %18 = sbr.rel (0) target = $region5
    $region4: #{tpu_custom_call.1} parent=1 // pred_region
      %s20 = ssub.s32 256, 256
      %21 = vsyncadd [#allocation4], %s20
      %s23 = sshll.u32 [#allocation3], 4
      %s24 = int_to_ptr.vmem [resolvable:$true] %s23
      %26 = dma.hbm_to_vmem [thread:$0]  %s0, 256, %s24, [#allocation4]
    $region5: #{tpu_custom_call.1} parent=1 // pred_fallthru
      _
    // Predicated region
    $region6: #{tpu_custom_call.1} parent=1 // pred_check
      _
    $region7: #{tpu_custom_call.1} parent=1 // pred_check_branch
      %28 = sbr.rel (0) target = $region9
    $region8: #{tpu_custom_call.1} parent=1 // pred_region
      %s30 = ssub.s32 32, 32
      %31 = vsyncadd [#allocation7], %s30
      %s33 = sshll.u32 [#allocation6], 4
      %s34 = int_to_ptr.vmem [resolvable:$true] %s33
      %36 = dma.hbm_to_vmem [thread:$0]  %s1, 32, %s34, [#allocation7]
    $region9: #{tpu_custom_call.1} parent=1 // pred_fallthru
      _
    // Predicated region
    $region10: #{tpu_custom_call.1} parent=1 // pred_check
      _
    $region11: #{tpu_custom_call.1} parent=1 // pred_check_branch
      %38 = sbr.rel (0) target = $region13
    $region12: #{tpu_custom_call.1} parent=1 // pred_region
      _
    $region13: #{tpu_custom_call.1} parent=1 // pred_fallthru
      _
    // Predicated region
    $region14: #{tpu_custom_call.1} parent=1 // pred_check
      _
    $region15: #{tpu_custom_call.1} parent=1 // pred_check_branch
      %40 = sbr.rel (0) target = $region17
    $region16: #{tpu_custom_call.1} parent=1 // pred_region
      %s42 = ssub.s32 8192, 8192
      %43 = vsyncadd [#allocation7], %s42
      %s44 = sshll.u32 [#allocation8], 4
      %s45 = int_to_ptr.vmem [resolvable:$true] %s44
      %50 = dma.hbm_to_vmem [thread:$0]  %s3, 8192, %s45, [#allocation7], 64, 64, 4
    $region17: #{tpu_custom_call.1} parent=1 // pred_fallthru
      _
    // Predicated region
    $region18: #{tpu_custom_call.1} parent=1 // pred_check
      _
    $region19: #{tpu_custom_call.1} parent=1 // pred_check_branch
      %52 = sbr.rel (0) target = $region21
    $region20: #{tpu_custom_call.1} parent=1 // pred_region
      _
    $region21: #{tpu_custom_call.1} parent=1 // pred_fallthru
      _
    // Predicated region
    $region22: #{tpu_custom_call.1} parent=1 // pred_check
      _
    $region23: #{tpu_custom_call.1} parent=1 // pred_check_branch
      %54 = sbr.rel (0) target = $region25
    $region24: #{tpu_custom_call.1} parent=1 // pred_region
      _
    $region25: #{tpu_custom_call.1} parent=1 // pred_fallthru
      _
    // Predicated region
    $region26: #{tpu_custom_call.1} parent=1 // pred_check
      _
    $region27: #{tpu_custom_call.1} parent=1 // pred_check_branch
      %56 = sbr.rel (0) target = $region29
    $region28: #{tpu_custom_call.1} parent=1 // pred_region
      %s58 = ssub.s32 1024, 1024
      %59 = vsyncadd [#allocation10], %s58
      %s60 = sshll.u32 [#allocation9], 4
      %s61 = int_to_ptr.vmem [resolvable:$true] %s60
      %66 = dma.hbm_to_vmem [thread:$0]  %s6, 1024, %s61, [#allocation10], 64, 64, 4
    $region29: #{tpu_custom_call.1} parent=1 // pred_fallthru
      _
    // Predicated region
    $region30: #{tpu_custom_call.1} parent=1 // pred_check
      _
    $region31: #{tpu_custom_call.1} parent=1 // pred_check_branch
      %68 = sbr.rel (0) target = $region33
    $region32: #{tpu_custom_call.1} parent=1 // pred_region
      _
    $region33: #{tpu_custom_call.1} parent=1 // pred_fallthru
      _
    // Predicated region
    $region34: #{tpu_custom_call.1} parent=1 // pred_check
      _
    $region35: #{tpu_custom_call.1} parent=1 // pred_check_branch
      %70 = sbr.rel (0) target = $region37
    $region36: #{tpu_custom_call.1} parent=1 // pred_region
      %71 = dma.done [#allocation4], 256
    $region37: #{tpu_custom_call.1} parent=1 // pred_fallthru
      _
    // Predicated region
    $region38: #{tpu_custom_call.1} parent=1 // pred_check
      _
    $region39: #{tpu_custom_call.1} parent=1 // pred_check_branch
      %73 = sbr.rel (0) target = $region41
    $region40: #{tpu_custom_call.1} parent=1 // pred_region
      %74 = dma.done [#allocation7], 32
    $region41: #{tpu_custom_call.1} parent=1 // pred_fallthru
      _
    // Predicated region
    $region42: #{tpu_custom_call.1} parent=1 // pred_check
      _
    $region43: #{tpu_custom_call.1} parent=1 // pred_check_branch
      %76 = sbr.rel (0) target = $region45
    $region44: #{tpu_custom_call.1} parent=1 // pred_region
      %77 = dma.done [#allocation7], 8192
    $region45: #{tpu_custom_call.1} parent=1 // pred_fallthru
      _
    // Predicated region
    $region46: #{tpu_custom_call.1} parent=1 // pred_check
      _
    $region47: #{tpu_custom_call.1} parent=1 // pred_check_branch
      %79 = sbr.rel (0) target = $region49
    $region48: #{tpu_custom_call.1} parent=1 // pred_region
      %80 = dma.done [#allocation10], 1024
    $region49: #{tpu_custom_call.1} parent=1 // pred_fallthru
      _
    %p82 = scmp.eq.s32.totalorder 0, 0
    // Predicated region
    $region50: #{tpu_custom_call.1} parent=1 // pred_check
      %p83 = pneg %p82
    $region51: #{tpu_custom_call.1} parent=1 // pred_check_branch
      %85 = sbr.rel (%p83) target = $region53
    $region52: #{tpu_custom_call.1} parent=1 // pred_region
      %v86 = vld [vmem:[#allocation6] sm:$0x3]
      %v87 = vpack.c.bf16 %v86, %v86
      %v88 = vld [vmem:[%s4] sm:$0xf]
      %v89 = vld [vmem:[%s5] sm:$0x1]
      %v91 = vlaneseq
      %v92 = vshrl.u32 %v91, 7
      %v93 = vsub.s32 0, %v92
      %v94 = vrot.slane %v89, %v93
      %vm96 = vcmask 64512
      %v98 = vsel %vm96, %v87, 0
      %vm100 = vcmask 1043456
      %v102 = vsel %vm100, %v88, 0
      %104 = vmatprep.subr.bf16.mxu0 0
      %105 = vmatpush1.bf16.msra.mxu0 0
      %106 = vmatprep.subr.bf16.mxu0 0
      %107 = vmatpush1.bf16.msra.mxu0 0
      %108 = vmatprep.subr.bf16.mxu0 0
      %109 = vmatpush1.bf16.msra.mxu0 0
      %110 = vmatprep.subr.bf16.mxu0 0
      %111 = vmatpush1.bf16.msra.mxu0 0
      %112 = vmatprep.subr.bf16.mxu0 0
      %113 = vmatpush1.bf16.msra.mxu0 0
      %114 = vmatprep.subr.bf16.mxu0 0
      %115 = vmatpush1.bf16.msra.mxu0 0
      %116 = vmatprep.subr.bf16.mxu0 0
      %117 = vmatpush1.bf16.msra.mxu0 0
      %118 = vmatprep.subr.bf16.mxu0 0
      %119 = vmatpush1.bf16.msra.mxu0 %v102
      %120 = vmatprep.subr.bf16.mxu0 0
      %121 = vmatpush2.bf16.msra.mxu0 0
      %122 = vmatprep.subr.bf16.mxu0 0
      %123 = vmatpush2.bf16.msra.mxu0 0
      %124 = vmatprep.subr.bf16.mxu0 0
      %125 = vmatpush2.bf16.msra.mxu0 0
      %126 = vmatprep.subr.bf16.mxu0 0
      %127 = vmatpush2.bf16.msra.mxu0 0
      %128 = vmatprep.subr.bf16.mxu0 0
      %129 = vmatpush2.bf16.msra.mxu0 0
      %130 = vmatprep.subr.bf16.mxu0 0
      %131 = vmatpush2.bf16.msra.mxu0 0
      %132 = vmatprep.subr.bf16.mxu0 0
      %133 = vmatpush2.bf16.msra.mxu0 0
      %134 = vmatprep.subr.bf16.mxu0 0
      %135 = vmatpush2.bf16.msra.mxu0 0
      %136 = vmatprep.mubr.bf16.mxu0 0
      %137 = vmatmul.mubr.bf16.gmra.mxu0 %v98
      %v138 = vpop.f32.mrf.mxu0
      %v139 = vadd.f32 %v94, %v138
      %v140 = vpop.f32.mrf.mxu0
      %v141 = vpop.f32.mrf.mxu0
      %v142 = vpop.f32.mrf.mxu0
      %143 = vdwg.mxu0
      %144 = vst [vmem:[#allocation2] sm:$0x3] %v139
      %145 = vst [vmem:[#allocation11 + $0x2] sm:$0x3] 0.0
    $region53: #{tpu_custom_call.1} parent=1 // pred_fallthru
      _
    %v146 = vld [vmem:[#allocation2] sm:$0x3]
    %v147 = vld [vmem:[#allocation3] sm:$0xff]
    %v148 = vld [vmem:[#allocation3 + $0x8] sm:$0xff]
    %v151 = vcombine.high %v147, %v147
    %v153 = vunpack.c.l.s4 1983009808
    %v154 = vunpack.c.0.s8 %v153
    %v155 = vlaneseq
    %v156 = vshrl.u32 %v155, 7
    %v157 = vsub.s32 %v154, %v156
    %v158 = vrot.slane %v147, %v157
    %v160 = vunpack.c.l.s4 1983009808
    %v161 = vunpack.c.0.s8 %v160
    %v162 = vlaneseq
    %v163 = vshrl.u32 %v162, 7
    %v164 = vsub.s32 %v161, %v163
    %v165 = vrot.slane %v151, %v164
    %v166 = vcombine.high %v158, %v158
    %v167 = vcombine.high %v165, %v165
    %v168 = vcombine.high %v148, %v148
    %v170 = vunpack.c.l.s4 1983009808
    %v171 = vunpack.c.0.s8 %v170
    %v172 = vlaneseq
    %v173 = vshrl.u32 %v172, 7
    %v174 = vsub.s32 %v171, %v173
    %v175 = vrot.slane %v148, %v174
    %v177 = vunpack.c.l.s4 1983009808
    %v178 = vunpack.c.0.s8 %v177
    %v179 = vlaneseq
    %v180 = vshrl.u32 %v179, 7
    %v181 = vsub.s32 %v178, %v180
    %v182 = vrot.slane %v168, %v181
    %v183 = vcombine.high %v175, %v175
    %v184 = vcombine.high %v182, %v182
    %v193 = vpack.c.bf16 %v158, %v158
    %v194 = vpack.c.bf16 %v166, %v166
    %v195 = vpack.c.bf16 %v165, %v165
    %v196 = vpack.c.bf16 %v167, %v167
    %v197 = vpack.c.bf16 %v175, %v175
    %v198 = vpack.c.bf16 %v183, %v183
    %v199 = vpack.c.bf16 %v182, %v182
    %v200 = vpack.c.bf16 %v184, %v184
    %v201 = vld [vmem:[#allocation8] sm:$0xf]
    %v202 = vld [vmem:[#allocation8 + $0x4] sm:$0xf]
    %v203 = vld [vmem:[#allocation8 + $0x8] sm:$0xf]
    %v204 = vld [vmem:[#allocation8 + $0xc] sm:$0xf]
    %v205 = vld [vmem:[#allocation8 + $0x10] sm:$0xf]
    %v206 = vld [vmem:[#allocation8 + $0x14] sm:$0xf]
    %v207 = vld [vmem:[#allocation8 + $0x18] sm:$0xf]
    %v208 = vld [vmem:[#allocation8 + $0x1c] sm:$0xf]
    %v209 = vld [vmem:[#allocation8 + $0x20] sm:$0xf]
    %v210 = vld [vmem:[#allocation8 + $0x24] sm:$0xf]
    %v211 = vld [vmem:[#allocation8 + $0x28] sm:$0xf]
    %v212 = vld [vmem:[#allocation8 + $0x2c] sm:$0xf]
    %v213 = vld [vmem:[#allocation8 + $0x30] sm:$0xf]
    %v214 = vld [vmem:[#allocation8 + $0x34] sm:$0xf]
    %v215 = vld [vmem:[#allocation8 + $0x38] sm:$0xf]
    %v216 = vld [vmem:[#allocation8 + $0x3c] sm:$0xf]
    %v217 = vld [vmem:[#allocation8 + $0x40] sm:$0xf]
    %v218 = vld [vmem:[#allocation8 + $0x44] sm:$0xf]
    %v219 = vld [vmem:[#allocation8 + $0x48] sm:$0xf]
    %v220 = vld [vmem:[#allocation8 + $0x4c] sm:$0xf]
    %v221 = vld [vmem:[#allocation8 + $0x50] sm:$0xf]
    %v222 = vld [vmem:[#allocation8 + $0x54] sm:$0xf]
    %v223 = vld [vmem:[#allocation8 + $0x58] sm:$0xf]
    %v224 = vld [vmem:[#allocation8 + $0x5c] sm:$0xf]
    %v225 = vld [vmem:[#allocation8 + $0x60] sm:$0xf]
    %v226 = vld [vmem:[#allocation8 + $0x64] sm:$0xf]
    %v227 = vld [vmem:[#allocation8 + $0x68] sm:$0xf]
    %v228 = vld [vmem:[#allocation8 + $0x6c] sm:$0xf]
    %v229 = vld [vmem:[#allocation8 + $0x70] sm:$0xf]
    %v230 = vld [vmem:[#allocation8 + $0x74] sm:$0xf]
    %v231 = vld [vmem:[#allocation8 + $0x78] sm:$0xf]
    %v232 = vld [vmem:[#allocation8 + $0x7c] sm:$0xf]
    %v233 = vld [vmem:[#allocation8 + $0x80] sm:$0xf]
    %v234 = vld [vmem:[#allocation8 + $0x84] sm:$0xf]
    %v235 = vld [vmem:[#allocation8 + $0x88] sm:$0xf]
    %v236 = vld [vmem:[#allocation8 + $0x8c] sm:$0xf]
    %v237 = vld [vmem:[#allocation8 + $0x90] sm:$0xf]
    %v238 = vld [vmem:[#allocation8 + $0x94] sm:$0xf]
    %v239 = vld [vmem:[#allocation8 + $0x98] sm:$0xf]
    %v240 = vld [vmem:[#allocation8 + $0x9c] sm:$0xf]
    %v241 = vld [vmem:[#allocation8 + $0xa0] sm:$0xf]
    %v242 = vld [vmem:[#allocation8 + $0xa4] sm:$0xf]
    %v243 = vld [vmem:[#allocation8 + $0xa8] sm:$0xf]
    %v244 = vld [vmem:[#allocation8 + $0xac] sm:$0xf]
    %v245 = vld [vmem:[#allocation8 + $0xb0] sm:$0xf]
    %v246 = vld [vmem:[#allocation8 + $0xb4] sm:$0xf]
    %v247 = vld [vmem:[#allocation8 + $0xb8] sm:$0xf]
    %v248 = vld [vmem:[#allocation8 + $0xbc] sm:$0xf]
    %v249 = vld [vmem:[#allocation8 + $0xc0] sm:$0xf]
    %v250 = vld [vmem:[#allocation8 + $0xc4] sm:$0xf]
    %v251 = vld [vmem:[#allocation8 + $0xc8] sm:$0xf]
    %v252 = vld [vmem:[#allocation8 + $0xcc] sm:$0xf]
    %v253 = vld [vmem:[#allocation8 + $0xd0] sm:$0xf]
    %v254 = vld [vmem:[#allocation8 + $0xd4] sm:$0xf]
    %v255 = vld [vmem:[#allocation8 + $0xd8] sm:$0xf]
    %v256 = vld [vmem:[#allocation8 + $0xdc] sm:$0xf]
    %v257 = vld [vmem:[#allocation8 + $0xe0] sm:$0xf]
    %v258 = vld [vmem:[#allocation8 + $0xe4] sm:$0xf]
    %v259 = vld [vmem:[#allocation8 + $0xe8] sm:$0xf]
    %v260 = vld [vmem:[#allocation8 + $0xec] sm:$0xf]
    %v261 = vld [vmem:[#allocation8 + $0xf0] sm:$0xf]
    %v262 = vld [vmem:[#allocation8 + $0xf4] sm:$0xf]
    %v263 = vld [vmem:[#allocation8 + $0xf8] sm:$0xf]
    %v264 = vld [vmem:[#allocation8 + $0xfc] sm:$0xf]
    %v265 = vld [vmem:[#allocation8 + $0x100] sm:$0xf]
    %v266 = vld [vmem:[#allocation8 + $0x104] sm:$0xf]
    %v267 = vld [vmem:[#allocation8 + $0x108] sm:$0xf]
    %v268 = vld [vmem:[#allocation8 + $0x10c] sm:$0xf]
    %v269 = vld [vmem:[#allocation8 + $0x110] sm:$0xf]
    %v270 = vld [vmem:[#allocation8 + $0x114] sm:$0xf]
    %v271 = vld [vmem:[#allocation8 + $0x118] sm:$0xf]
    %v272 = vld [vmem:[#allocation8 + $0x11c] sm:$0xf]
    %v273 = vld [vmem:[#allocation8 + $0x120] sm:$0xf]
    %v274 = vld [vmem:[#allocation8 + $0x124] sm:$0xf]
    %v275 = vld [vmem:[#allocation8 + $0x128] sm:$0xf]
    %v276 = vld [vmem:[#allocation8 + $0x12c] sm:$0xf]
    %v277 = vld [vmem:[#allocation8 + $0x130] sm:$0xf]
    %v278 = vld [vmem:[#allocation8 + $0x134] sm:$0xf]
    %v279 = vld [vmem:[#allocation8 + $0x138] sm:$0xf]
    %v280 = vld [vmem:[#allocation8 + $0x13c] sm:$0xf]
    %v281 = vld [vmem:[#allocation8 + $0x140] sm:$0xf]
    %v282 = vld [vmem:[#allocation8 + $0x144] sm:$0xf]
    %v283 = vld [vmem:[#allocation8 + $0x148] sm:$0xf]
    %v284 = vld [vmem:[#allocation8 + $0x14c] sm:$0xf]
    %v285 = vld [vmem:[#allocation8 + $0x150] sm:$0xf]
    %v286 = vld [vmem:[#allocation8 + $0x154] sm:$0xf]
    %v287 = vld [vmem:[#allocation8 + $0x158] sm:$0xf]
    %v288 = vld [vmem:[#allocation8 + $0x15c] sm:$0xf]
    %v289 = vld [vmem:[#allocation8 + $0x160] sm:$0xf]
    %v290 = vld [vmem:[#allocation8 + $0x164] sm:$0xf]
    %v291 = vld [vmem:[#allocation8 + $0x168] sm:$0xf]
    %v292 = vld [vmem:[#allocation8 + $0x16c] sm:$0xf]
    %v293 = vld [vmem:[#allocation8 + $0x170] sm:$0xf]
    %v294 = vld [vmem:[#allocation8 + $0x174] sm:$0xf]
    %v295 = vld [vmem:[#allocation8 + $0x178] sm:$0xf]
    %v296 = vld [vmem:[#allocation8 + $0x17c] sm:$0xf]
    %v297 = vld [vmem:[#allocation8 + $0x180] sm:$0xf]
    %v298 = vld [vmem:[#allocation8 + $0x184] sm:$0xf]
    %v299 = vld [vmem:[#allocation8 + $0x188] sm:$0xf]
    %v300 = vld [vmem:[#allocation8 + $0x18c] sm:$0xf]
    %v301 = vld [vmem:[#allocation8 + $0x190] sm:$0xf]
    %v302 = vld [vmem:[#allocation8 + $0x194] sm:$0xf]
    %v303 = vld [vmem:[#allocation8 + $0x198] sm:$0xf]
    %v304 = vld [vmem:[#allocation8 + $0x19c] sm:$0xf]
    %v305 = vld [vmem:[#allocation8 + $0x1a0] sm:$0xf]
    %v306 = vld [vmem:[#allocation8 + $0x1a4] sm:$0xf]
    %v307 = vld [vmem:[#allocation8 + $0x1a8] sm:$0xf]
    %v308 = vld [vmem:[#allocation8 + $0x1ac] sm:$0xf]
    %v309 = vld [vmem:[#allocation8 + $0x1b0] sm:$0xf]
    %v310 = vld [vmem:[#allocation8 + $0x1b4] sm:$0xf]
    %v311 = vld [vmem:[#allocation8 + $0x1b8] sm:$0xf]
    %v312 = vld [vmem:[#allocation8 + $0x1bc] sm:$0xf]
    %v313 = vld [vmem:[#allocation8 + $0x1c0] sm:$0xf]
    %v314 = vld [vmem:[#allocation8 + $0x1c4] sm:$0xf]
    %v315 = vld [vmem:[#allocation8 + $0x1c8] sm:$0xf]
    %v316 = vld [vmem:[#allocation8 + $0x1cc] sm:$0xf]
    %v317 = vld [vmem:[#allocation8 + $0x1d0] sm:$0xf]
    %v318 = vld [vmem:[#allocation8 + $0x1d4] sm:$0xf]
    %v319 = vld [vmem:[#allocation8 + $0x1d8] sm:$0xf]
    %v320 = vld [vmem:[#allocation8 + $0x1dc] sm:$0xf]
    %v321 = vld [vmem:[#allocation8 + $0x1e0] sm:$0xf]
    %v322 = vld [vmem:[#allocation8 + $0x1e4] sm:$0xf]
    %v323 = vld [vmem:[#allocation8 + $0x1e8] sm:$0xf]
    %v324 = vld [vmem:[#allocation8 + $0x1ec] sm:$0xf]
    %v325 = vld [vmem:[#allocation8 + $0x1f0] sm:$0xf]
    %v326 = vld [vmem:[#allocation8 + $0x1f4] sm:$0xf]
    %v327 = vld [vmem:[#allocation8 + $0x1f8] sm:$0xf]
    %v328 = vld [vmem:[#allocation8 + $0x1fc] sm:$0xf]
    %v457 = vunpack.c.l.b16 %v201
    %v458 = vunpack.c.l.b16 %v202
    %v459 = vunpack.c.l.b16 %v203
    %v460 = vunpack.c.l.b16 %v204
    %v461 = vunpack.c.l.b16 %v205
    %v462 = vunpack.c.l.b16 %v206
    %v463 = vunpack.c.l.b16 %v207
    %v464 = vunpack.c.l.b16 %v208
    %v465 = vunpack.c.l.b16 %v209
    %v466 = vunpack.c.l.b16 %v210
    %v467 = vunpack.c.l.b16 %v211
    %v468 = vunpack.c.l.b16 %v212
    %v469 = vunpack.c.l.b16 %v213
    %v470 = vunpack.c.l.b16 %v214
    %v471 = vunpack.c.l.b16 %v215
    %v472 = vunpack.c.l.b16 %v216
    %v473 = vunpack.c.l.b16 %v217
    %v474 = vunpack.c.l.b16 %v218
    %v475 = vunpack.c.l.b16 %v219
    %v476 = vunpack.c.l.b16 %v220
    %v477 = vunpack.c.l.b16 %v221
    %v478 = vunpack.c.l.b16 %v222
    %v479 = vunpack.c.l.b16 %v223
    %v480 = vunpack.c.l.b16 %v224
    %v481 = vunpack.c.l.b16 %v225
    %v482 = vunpack.c.l.b16 %v226
    %v483 = vunpack.c.l.b16 %v227
    %v484 = vunpack.c.l.b16 %v228
    %v485 = vunpack.c.l.b16 %v229
    %v486 = vunpack.c.l.b16 %v230
    %v487 = vunpack.c.l.b16 %v231
    %v488 = vunpack.c.l.b16 %v232
    %v489 = vunpack.c.l.b16 %v233
    %v490 = vunpack.c.l.b16 %v234
    %v491 = vunpack.c.l.b16 %v235
    %v492 = vunpack.c.l.b16 %v236
    %v493 = vunpack.c.l.b16 %v237
    %v494 = vunpack.c.l.b16 %v238
    %v495 = vunpack.c.l.b16 %v239
    %v496 = vunpack.c.l.b16 %v240
    %v497 = vunpack.c.l.b16 %v241
    %v498 = vunpack.c.l.b16 %v242
    %v499 = vunpack.c.l.b16 %v243
    %v500 = vunpack.c.l.b16 %v244
    %v501 = vunpack.c.l.b16 %v245
    %v502 = vunpack.c.l.b16 %v246
    %v503 = vunpack.c.l.b16 %v247
    %v504 = vunpack.c.l.b16 %v248
    %v505 = vunpack.c.l.b16 %v249
    %v506 = vunpack.c.l.b16 %v250
    %v507 = vunpack.c.l.b16 %v251
    %v508 = vunpack.c.l.b16 %v252
    %v509 = vunpack.c.l.b16 %v253
    %v510 = vunpack.c.l.b16 %v254
    %v511 = vunpack.c.l.b16 %v255
    %v512 = vunpack.c.l.b16 %v256
    %v513 = vunpack.c.l.b16 %v257
    %v514 = vunpack.c.l.b16 %v258
    %v515 = vunpack.c.l.b16 %v259
    %v516 = vunpack.c.l.b16 %v260
    %v517 = vunpack.c.l.b16 %v261
    %v518 = vunpack.c.l.b16 %v262
    %v519 = vunpack.c.l.b16 %v263
    %v520 = vunpack.c.l.b16 %v264
    %v521 = vunpack.c.l.b16 %v265
    %v522 = vunpack.c.l.b16 %v266
    %v523 = vunpack.c.l.b16 %v267
    %v524 = vunpack.c.l.b16 %v268
    %v525 = vunpack.c.l.b16 %v269
    %v526 = vunpack.c.l.b16 %v270
    %v527 = vunpack.c.l.b16 %v271
    %v528 = vunpack.c.l.b16 %v272
    %v529 = vunpack.c.l.b16 %v273
    %v530 = vunpack.c.l.b16 %v274
    %v531 = vunpack.c.l.b16 %v275
    %v532 = vunpack.c.l.b16 %v276
    %v533 = vunpack.c.l.b16 %v277
    %v534 = vunpack.c.l.b16 %v278
    %v535 = vunpack.c.l.b16 %v279
    %v536 = vunpack.c.l.b16 %v280
    %v537 = vunpack.c.l.b16 %v281
    %v538 = vunpack.c.l.b16 %v282
    %v539 = vunpack.c.l.b16 %v283
    %v540 = vunpack.c.l.b16 %v284
    %v541 = vunpack.c.l.b16 %v285
    %v542 = vunpack.c.l.b16 %v286
    %v543 = vunpack.c.l.b16 %v287
    %v544 = vunpack.c.l.b16 %v288
    %v545 = vunpack.c.l.b16 %v289
    %v546 = vunpack.c.l.b16 %v290
    %v547 = vunpack.c.l.b16 %v291
    %v548 = vunpack.c.l.b16 %v292
    %v549 = vunpack.c.l.b16 %v293
    %v550 = vunpack.c.l.b16 %v294
    %v551 = vunpack.c.l.b16 %v295
    %v552 = vunpack.c.l.b16 %v296
    %v553 = vunpack.c.l.b16 %v297
    %v554 = vunpack.c.l.b16 %v298
    %v555 = vunpack.c.l.b16 %v299
    %v556 = vunpack.c.l.b16 %v300
    %v557 = vunpack.c.l.b16 %v301
    %v558 = vunpack.c.l.b16 %v302
    %v559 = vunpack.c.l.b16 %v303
    %v560 = vunpack.c.l.b16 %v304
    %v561 = vunpack.c.l.b16 %v305
    %v562 = vunpack.c.l.b16 %v306
    %v563 = vunpack.c.l.b16 %v307
    %v564 = vunpack.c.l.b16 %v308
    %v565 = vunpack.c.l.b16 %v309
    %v566 = vunpack.c.l.b16 %v310
    %v567 = vunpack.c.l.b16 %v311
    %v568 = vunpack.c.l.b16 %v312
    %v569 = vunpack.c.l.b16 %v313
    %v570 = vunpack.c.l.b16 %v314
    %v571 = vunpack.c.l.b16 %v315
    %v572 = vunpack.c.l.b16 %v316
    %v573 = vunpack.c.l.b16 %v317
    %v574 = vunpack.c.l.b16 %v318
    %v575 = vunpack.c.l.b16 %v319
    %v576 = vunpack.c.l.b16 %v320
    %v577 = vunpack.c.l.b16 %v321
    %v578 = vunpack.c.l.b16 %v322
    %v579 = vunpack.c.l.b16 %v323
    %v580 = vunpack.c.l.b16 %v324
    %v581 = vunpack.c.l.b16 %v325
    %v582 = vunpack.c.l.b16 %v326
    %v583 = vunpack.c.l.b16 %v327
    %v584 = vunpack.c.l.b16 %v328
    %v585 = vpack.c.b16 %v458, %v457
    %v586 = vpack.c.b16 %v460, %v459
    %v587 = vpack.c.b16 %v462, %v461
    %v588 = vpack.c.b16 %v464, %v463
    %v589 = vpack.c.b16 %v466, %v465
    %v590 = vpack.c.b16 %v468, %v467
    %v591 = vpack.c.b16 %v470, %v469
    %v592 = vpack.c.b16 %v472, %v471
    %v593 = vpack.c.b16 %v474, %v473
    %v594 = vpack.c.b16 %v476, %v475
    %v595 = vpack.c.b16 %v478, %v477
    %v596 = vpack.c.b16 %v480, %v479
    %v597 = vpack.c.b16 %v482, %v481
    %v598 = vpack.c.b16 %v484, %v483
    %v599 = vpack.c.b16 %v486, %v485
    %v600 = vpack.c.b16 %v488, %v487
    %v601 = vpack.c.b16 %v490, %v489
    %v602 = vpack.c.b16 %v492, %v491
    %v603 = vpack.c.b16 %v494, %v493
    %v604 = vpack.c.b16 %v496, %v495
    %v605 = vpack.c.b16 %v498, %v497
    %v606 = vpack.c.b16 %v500, %v499
    %v607 = vpack.c.b16 %v502, %v501
    %v608 = vpack.c.b16 %v504, %v503
    %v609 = vpack.c.b16 %v506, %v505
    %v610 = vpack.c.b16 %v508, %v507
    %v611 = vpack.c.b16 %v510, %v509
    %v612 = vpack.c.b16 %v512, %v511
    %v613 = vpack.c.b16 %v514, %v513
    %v614 = vpack.c.b16 %v516, %v515
    %v615 = vpack.c.b16 %v518, %v517
    %v616 = vpack.c.b16 %v520, %v519
    %v617 = vpack.c.b16 %v522, %v521
    %v618 = vpack.c.b16 %v524, %v523
    %v619 = vpack.c.b16 %v526, %v525
    %v620 = vpack.c.b16 %v528, %v527
    %v621 = vpack.c.b16 %v530, %v529
    %v622 = vpack.c.b16 %v532, %v531
    %v623 = vpack.c.b16 %v534, %v533
    %v624 = vpack.c.b16 %v536, %v535
    %v625 = vpack.c.b16 %v538, %v537
    %v626 = vpack.c.b16 %v540, %v539
    %v627 = vpack.c.b16 %v542, %v541
    %v628 = vpack.c.b16 %v544, %v543
    %v629 = vpack.c.b16 %v546, %v545
    %v630 = vpack.c.b16 %v548, %v547
    %v631 = vpack.c.b16 %v550, %v549
    %v632 = vpack.c.b16 %v552, %v551
    %v633 = vpack.c.b16 %v554, %v553
    %v634 = vpack.c.b16 %v556, %v555
    %v635 = vpack.c.b16 %v558, %v557
    %v636 = vpack.c.b16 %v560, %v559
    %v637 = vpack.c.b16 %v562, %v561
    %v638 = vpack.c.b16 %v564, %v563
    %v639 = vpack.c.b16 %v566, %v565
    %v640 = vpack.c.b16 %v568, %v567
    %v641 = vpack.c.b16 %v570, %v569
    %v642 = vpack.c.b16 %v572, %v571
    %v643 = vpack.c.b16 %v574, %v573
    %v644 = vpack.c.b16 %v576, %v575
    %v645 = vpack.c.b16 %v578, %v577
    %v646 = vpack.c.b16 %v580, %v579
    %v647 = vpack.c.b16 %v582, %v581
    %v648 = vpack.c.b16 %v584, %v583
    %713 = vmatprep.subr.bf16.mxu0 0
    %714 = vmatpush1.bf16.msra.mxu0 %v592
    %715 = vmatprep.subr.bf16.mxu0 0
    %716 = vmatpush1.bf16.msra.mxu0 %v591
    %717 = vmatprep.subr.bf16.mxu0 0
    %718 = vmatpush1.bf16.msra.mxu0 %v590
    %719 = vmatprep.subr.bf16.mxu0 0
    %720 = vmatpush1.bf16.msra.mxu0 %v589
    %721 = vmatprep.subr.bf16.mxu0 0
    %722 = vmatpush1.bf16.msra.mxu0 %v588
    %723 = vmatprep.subr.bf16.mxu0 0
    %724 = vmatpush1.bf16.msra.mxu0 %v587
    %725 = vmatprep.subr.bf16.mxu0 0
    %726 = vmatpush1.bf16.msra.mxu0 %v586
    %727 = vmatprep.subr.bf16.mxu0 0
    %728 = vmatpush1.bf16.msra.mxu0 %v585
    %729 = vmatprep.subr.bf16.mxu0 0
    %730 = vmatpush2.bf16.msra.mxu0 %v600
    %731 = vmatprep.subr.bf16.mxu0 0
    %732 = vmatpush2.bf16.msra.mxu0 %v599
    %733 = vmatprep.subr.bf16.mxu0 0
    %734 = vmatpush2.bf16.msra.mxu0 %v598
    %735 = vmatprep.subr.bf16.mxu0 0
    %736 = vmatpush2.bf16.msra.mxu0 %v597
    %737 = vmatprep.subr.bf16.mxu0 0
    %738 = vmatpush2.bf16.msra.mxu0 %v596
    %739 = vmatprep.subr.bf16.mxu0 0
    %740 = vmatpush2.bf16.msra.mxu0 %v595
    %741 = vmatprep.subr.bf16.mxu0 0
    %742 = vmatpush2.bf16.msra.mxu0 %v594
    %743 = vmatprep.subr.bf16.mxu0 0
    %744 = vmatpush2.bf16.msra.mxu0 %v593
    %745 = vmatprep.mubr.bf16.mxu0 %v194
    %746 = vmatmul.mubr.bf16.gmra.mxu0 %v193
    %v747 = vpop.f32.mrf.mxu0
    %v748 = vadd.f32 0.0, %v747
    %v749 = vpop.f32.mrf.mxu0
    %v750 = vpop.f32.mrf.mxu0
    %v751 = vpop.f32.mrf.mxu0
    %752 = vdwg.mxu0
    %753 = vmatprep.subr.bf16.mxu0 0
    %754 = vmatpush1.bf16.msra.mxu0 %v608
    %755 = vmatprep.subr.bf16.mxu0 0
    %756 = vmatpush1.bf16.msra.mxu0 %v607
    %757 = vmatprep.subr.bf16.mxu0 0
    %758 = vmatpush1.bf16.msra.mxu0 %v606
    %759 = vmatprep.subr.bf16.mxu0 0
    %760 = vmatpush1.bf16.msra.mxu0 %v605
    %761 = vmatprep.subr.bf16.mxu0 0
    %762 = vmatpush1.bf16.msra.mxu0 %v604
    %763 = vmatprep.subr.bf16.mxu0 0
    %764 = vmatpush1.bf16.msra.mxu0 %v603
    %765 = vmatprep.subr.bf16.mxu0 0
    %766 = vmatpush1.bf16.msra.mxu0 %v602
    %767 = vmatprep.subr.bf16.mxu0 0
    %768 = vmatpush1.bf16.msra.mxu0 %v601
    %769 = vmatprep.subr.bf16.mxu0 0
    %770 = vmatpush2.bf16.msra.mxu0 %v616
    %771 = vmatprep.subr.bf16.mxu0 0
    %772 = vmatpush2.bf16.msra.mxu0 %v615
    %773 = vmatprep.subr.bf16.mxu0 0
    %774 = vmatpush2.bf16.msra.mxu0 %v614
    %775 = vmatprep.subr.bf16.mxu0 0
    %776 = vmatpush2.bf16.msra.mxu0 %v613
    %777 = vmatprep.subr.bf16.mxu0 0
    %778 = vmatpush2.bf16.msra.mxu0 %v612
    %779 = vmatprep.subr.bf16.mxu0 0
    %780 = vmatpush2.bf16.msra.mxu0 %v611
    %781 = vmatprep.subr.bf16.mxu0 0
    %782 = vmatpush2.bf16.msra.mxu0 %v610
    %783 = vmatprep.subr.bf16.mxu0 0
    %784 = vmatpush2.bf16.msra.mxu0 %v609
    %785 = vmatprep.mubr.bf16.mxu0 %v196
    %786 = vmatmul.mubr.bf16.gmra.mxu0 %v195
    %v787 = vpop.f32.mrf.mxu0
    %v788 = vadd.f32 %v748, %v787
    %v789 = vpop.f32.mrf.mxu0
    %v790 = vpop.f32.mrf.mxu0
    %v791 = vpop.f32.mrf.mxu0
    %792 = vdwg.mxu0
    %793 = vmatprep.subr.bf16.mxu0 0
    %794 = vmatpush1.bf16.msra.mxu0 %v624
    %795 = vmatprep.subr.bf16.mxu0 0
    %796 = vmatpush1.bf16.msra.mxu0 %v623
    %797 = vmatprep.subr.bf16.mxu0 0
    %798 = vmatpush1.bf16.msra.mxu0 %v622
    %799 = vmatprep.subr.bf16.mxu0 0
    %800 = vmatpush1.bf16.msra.mxu0 %v621
    %801 = vmatprep.subr.bf16.mxu0 0
    %802 = vmatpush1.bf16.msra.mxu0 %v620
    %803 = vmatprep.subr.bf16.mxu0 0
    %804 = vmatpush1.bf16.msra.mxu0 %v619
    %805 = vmatprep.subr.bf16.mxu0 0
    %806 = vmatpush1.bf16.msra.mxu0 %v618
    %807 = vmatprep.subr.bf16.mxu0 0
    %808 = vmatpush1.bf16.msra.mxu0 %v617
    %809 = vmatprep.subr.bf16.mxu0 0
    %810 = vmatpush2.bf16.msra.mxu0 %v632
    %811 = vmatprep.subr.bf16.mxu0 0
    %812 = vmatpush2.bf16.msra.mxu0 %v631
    %813 = vmatprep.subr.bf16.mxu0 0
    %814 = vmatpush2.bf16.msra.mxu0 %v630
    %815 = vmatprep.subr.bf16.mxu0 0
    %816 = vmatpush2.bf16.msra.mxu0 %v629
    %817 = vmatprep.subr.bf16.mxu0 0
    %818 = vmatpush2.bf16.msra.mxu0 %v628
    %819 = vmatprep.subr.bf16.mxu0 0
    %820 = vmatpush2.bf16.msra.mxu0 %v627
    %821 = vmatprep.subr.bf16.mxu0 0
    %822 = vmatpush2.bf16.msra.mxu0 %v626
    %823 = vmatprep.subr.bf16.mxu0 0
    %824 = vmatpush2.bf16.msra.mxu0 %v625
    %825 = vmatprep.mubr.bf16.mxu0 %v198
    %826 = vmatmul.mubr.bf16.gmra.mxu0 %v197
    %v827 = vpop.f32.mrf.mxu0
    %v828 = vadd.f32 %v788, %v827
    %v829 = vpop.f32.mrf.mxu0
    %v830 = vpop.f32.mrf.mxu0
    %v831 = vpop.f32.mrf.mxu0
    %832 = vdwg.mxu0
    %833 = vmatprep.subr.bf16.mxu0 0
    %834 = vmatpush1.bf16.msra.mxu0 %v640
    %835 = vmatprep.subr.bf16.mxu0 0
    %836 = vmatpush1.bf16.msra.mxu0 %v639
    %837 = vmatprep.subr.bf16.mxu0 0
    %838 = vmatpush1.bf16.msra.mxu0 %v638
    %839 = vmatprep.subr.bf16.mxu0 0
    %840 = vmatpush1.bf16.msra.mxu0 %v637
    %841 = vmatprep.subr.bf16.mxu0 0
    %842 = vmatpush1.bf16.msra.mxu0 %v636
    %843 = vmatprep.subr.bf16.mxu0 0
    %844 = vmatpush1.bf16.msra.mxu0 %v635
    %845 = vmatprep.subr.bf16.mxu0 0
    %846 = vmatpush1.bf16.msra.mxu0 %v634
    %847 = vmatprep.subr.bf16.mxu0 0
    %848 = vmatpush1.bf16.msra.mxu0 %v633
    %849 = vmatprep.subr.bf16.mxu0 0
    %850 = vmatpush2.bf16.msra.mxu0 %v648
    %851 = vmatprep.subr.bf16.mxu0 0
    %852 = vmatpush2.bf16.msra.mxu0 %v647
    %853 = vmatprep.subr.bf16.mxu0 0
    %854 = vmatpush2.bf16.msra.mxu0 %v646
    %855 = vmatprep.subr.bf16.mxu0 0
    %856 = vmatpush2.bf16.msra.mxu0 %v645
    %857 = vmatprep.subr.bf16.mxu0 0
    %858 = vmatpush2.bf16.msra.mxu0 %v644
    %859 = vmatprep.subr.bf16.mxu0 0
    %860 = vmatpush2.bf16.msra.mxu0 %v643
    %861 = vmatprep.subr.bf16.mxu0 0
    %862 = vmatpush2.bf16.msra.mxu0 %v642
    %863 = vmatprep.subr.bf16.mxu0 0
    %864 = vmatpush2.bf16.msra.mxu0 %v641
    %865 = vmatprep.mubr.bf16.mxu0 %v200
    %866 = vmatmul.mubr.bf16.gmra.mxu0 %v199
    %v867 = vpop.f32.mrf.mxu0
    %v868 = vadd.f32 %v828, %v867
    %v869 = vpop.f32.mrf.mxu0
    %v870 = vpop.f32.mrf.mxu0
    %v871 = vpop.f32.mrf.mxu0
    %872 = vdwg.mxu0
    %v873 = vadd.f32 %v146, %v868
    %874 = vst [vmem:[#allocation2] sm:$0x3] %v873
    // Predicated region
    $region54: #{tpu_custom_call.1} parent=1 // pred_check
      %p875 = pneg %p82
    $region55: #{tpu_custom_call.1} parent=1 // pred_check_branch
      %877 = sbr.rel (%p875) target = $region57
    $region56: #{tpu_custom_call.1} parent=1 // pred_region
      %v878 = vld [vmem:[#allocation2] sm:$0x3]
      %vm879 = vcmp.ge.f32.partialorder %v878, 0.0
      %v880 = vmul.f32 %v878, 0.2
      %v881 = vsel %vm879, %v878, %v880
      %v882 = vpack.c.bf16 %v881, %v881
      %v883 = vld [vmem:[#allocation9] sm:$0xf]
      %v884 = vld [vmem:[#allocation9 + $0x4] sm:$0xf]
      %v885 = vld [vmem:[#allocation9 + $0x8] sm:$0xf]
      %v886 = vld [vmem:[#allocation9 + $0xc] sm:$0xf]
      %v887 = vld [vmem:[#allocation9 + $0x10] sm:$0xf]
      %v888 = vld [vmem:[#allocation9 + $0x14] sm:$0xf]
      %v889 = vld [vmem:[#allocation9 + $0x18] sm:$0xf]
      %v890 = vld [vmem:[#allocation9 + $0x1c] sm:$0xf]
      %v891 = vld [vmem:[#allocation9 + $0x20] sm:$0xf]
      %v892 = vld [vmem:[#allocation9 + $0x24] sm:$0xf]
      %v893 = vld [vmem:[#allocation9 + $0x28] sm:$0xf]
      %v894 = vld [vmem:[#allocation9 + $0x2c] sm:$0xf]
      %v895 = vld [vmem:[#allocation9 + $0x30] sm:$0xf]
      %v896 = vld [vmem:[#allocation9 + $0x34] sm:$0xf]
      %v897 = vld [vmem:[#allocation9 + $0x38] sm:$0xf]
      %v898 = vld [vmem:[#allocation9 + $0x3c] sm:$0xf]
      %v899 = vld [vmem:[%s7] sm:$0x1]
      %v901 = vlaneseq
      %v902 = vshrl.u32 %v901, 7
      %v903 = vsub.s32 0, %v902
      %v904 = vrot.slane %v899, %v903
      %v922 = vunpack.c.l.b16 %v883
      %v923 = vunpack.c.l.b16 %v884
      %v924 = vunpack.c.l.b16 %v885
      %v925 = vunpack.c.l.b16 %v886
      %v926 = vunpack.c.l.b16 %v887
      %v927 = vunpack.c.l.b16 %v888
      %v928 = vunpack.c.l.b16 %v889
      %v929 = vunpack.c.l.b16 %v890
      %v930 = vunpack.c.l.b16 %v891
      %v931 = vunpack.c.l.b16 %v892
      %v932 = vunpack.c.l.b16 %v893
      %v933 = vunpack.c.l.b16 %v894
      %v934 = vunpack.c.l.b16 %v895
      %v935 = vunpack.c.l.b16 %v896
      %v936 = vunpack.c.l.b16 %v897
      %v937 = vunpack.c.l.b16 %v898
      %v938 = vpack.c.b16 %v923, %v922
      %v939 = vpack.c.b16 %v925, %v924
      %v940 = vpack.c.b16 %v927, %v926
      %v941 = vpack.c.b16 %v929, %v928
      %v942 = vpack.c.b16 %v931, %v930
      %v943 = vpack.c.b16 %v933, %v932
      %v944 = vpack.c.b16 %v935, %v934
      %v945 = vpack.c.b16 %v937, %v936
      %954 = vmatprep.subr.bf16.mxu0 0
      %955 = vmatpush1.bf16.msra.mxu0 %v945
      %956 = vmatprep.subr.bf16.mxu0 0
      %957 = vmatpush1.bf16.msra.mxu0 %v944
      %958 = vmatprep.subr.bf16.mxu0 0
      %959 = vmatpush1.bf16.msra.mxu0 %v943
      %960 = vmatprep.subr.bf16.mxu0 0
      %961 = vmatpush1.bf16.msra.mxu0 %v942
      %962 = vmatprep.subr.bf16.mxu0 0
      %963 = vmatpush1.bf16.msra.mxu0 %v941
      %964 = vmatprep.subr.bf16.mxu0 0
      %965 = vmatpush1.bf16.msra.mxu0 %v940
      %966 = vmatprep.subr.bf16.mxu0 0
      %967 = vmatpush1.bf16.msra.mxu0 %v939
      %968 = vmatprep.subr.bf16.mxu0 0
      %969 = vmatpush1.bf16.msra.mxu0 %v938
      %970 = vmatprep.subr.bf16.mxu0 0
      %971 = vmatpush2.bf16.msra.mxu0 0
      %972 = vmatprep.subr.bf16.mxu0 0
      %973 = vmatpush2.bf16.msra.mxu0 0
      %974 = vmatprep.subr.bf16.mxu0 0
      %975 = vmatpush2.bf16.msra.mxu0 0
      %976 = vmatprep.subr.bf16.mxu0 0
      %977 = vmatpush2.bf16.msra.mxu0 0
      %978 = vmatprep.subr.bf16.mxu0 0
      %979 = vmatpush2.bf16.msra.mxu0 0
      %980 = vmatprep.subr.bf16.mxu0 0
      %981 = vmatpush2.bf16.msra.mxu0 0
      %982 = vmatprep.subr.bf16.mxu0 0
      %983 = vmatpush2.bf16.msra.mxu0 0
      %984 = vmatprep.subr.bf16.mxu0 0
      %985 = vmatpush2.bf16.msra.mxu0 0
      %986 = vmatprep.mubr.bf16.mxu0 0
      %987 = vmatmul.mubr.bf16.gmra.mxu0 %v882
      %v988 = vpop.f32.mrf.mxu0
      %v989 = vadd.f32 %v904, %v988
      %v990 = vpop.f32.mrf.mxu0
      %v991 = vpop.f32.mrf.mxu0
      %v992 = vpop.f32.mrf.mxu0
      %993 = vdwg.mxu0
      %v994 = vld [vmem:[%s2] sm:$0x3]
      %v995 = vmul.f32 %v989, 0.5
      %v996 = vmul.f32 %v995, 1.442695
      %v997 = vpow.pop %v996
      %999 = vrot.lane.b32.xlu0 %v997, 96
      %v1000 = vpop.permute.xlu0 %999
      %v1002 = vmul.f32 %v994, %v1000
      %v1003 = vadd.f32 %v1002, %v989
      %1004 = vst [vmem:[#allocation11] sm:$0x3] %v989
      %vm1005 = vcmask 254976
      %1006 = vst.msk [vmem:[#allocation11 + $0x2] sm:$0x3] %vm1005, %v1003
    $region57: #{tpu_custom_call.1} parent=1 // pred_fallthru
      _
    // Predicated region
    $region58: #{tpu_custom_call.1} parent=1 // pred_check
      _
    $region59: #{tpu_custom_call.1} parent=1 // pred_check_branch
      %1008 = sbr.rel (0) target = $region61
    $region60: #{tpu_custom_call.1} parent=1 // pred_region
      %s1010 = ssub.s32 64, 64
      %1011 = vsyncadd [#allocation5], %s1010
      %s1013 = sshll.u32 [#allocation11], 4
      %s1014 = int_to_ptr.vmem [resolvable:$true] %s1013
      %1016 = dma.vmem_to_hbm [thread:$0]  %s1014, 64, %s8, [#allocation5]
    $region61: #{tpu_custom_call.1} parent=1 // pred_fallthru
      _
    // Predicated region
    $region62: #{tpu_custom_call.1} parent=1 // pred_check
      _
    $region63: #{tpu_custom_call.1} parent=1 // pred_check_branch
      %1018 = sbr.rel (0) target = $region65
    $region64: #{tpu_custom_call.1} parent=1 // pred_region
      %1019 = dma.done [#allocation5], 64
    $region65: #{tpu_custom_call.1} parent=1 // pred_fallthru
      _
    %1020 = vsyncpa [#allocation4], 1
    %1021 = vsyncpa [#allocation7], 1
    %1022 = vsyncpa [#allocation10], 1
    %1023 = vsyncpa [#allocation5], 1

</llo_original>
